<compile_context>
chip_gen: v7x
topology: tpu7x:2x2x1
jax: 0.10.0
libtpu: 0.0.40
codegen_flags: <defaults>
</compile_context>

<pallas_src>
import functools

import numpy as np
import jax
import jax.numpy as jnp
from jax.experimental import pallas as pl
from jax.experimental.pallas import tpu as pltpu

# Hyper-parameters (stand-ins for opt.loss_lifted_neg_margin / opt.loss_lifted_l2).
MARGIN = 1.0
L2_WEIGHT = 0.005
EPS = 1e-6            # nn.PairwiseDistance default eps (added to the difference)
NEG_BIG = -1e30       # finite "-inf" so the online logsumexp never produces NaNs


def _round_up(x, m):
    return (x + m - 1) // m * m


def _lifted_kernel(a_ref, ct_ref, la_ref, lc_ref, out_ref,
                   m_pos, l_pos, m_neg, l_neg):
    """One (anchor-tile i, candidate-tile j) grid step.

    a_ref:  (TM, D)  anchor rows (padded batch rows)
    ct_ref: (D, TC)  candidate rows, pre-transposed (padded batch^T)
    la_ref: (TM, 1)  anchor labels    (int32, -1 => padding)
    lc_ref: (1, TC)  candidate labels (int32, -1 => padding)
    out_ref:(TM, 1)  per-anchor loss term (written on the last candidate tile)
    m_*,l_*:(TM, 1)  running max / rescaled sum of the online logsumexp
    """
    i = pl.program_id(0)
    j = pl.program_id(1)

    @pl.when(j == 0)
    def _init():
        m_pos[...] = jnp.full_like(m_pos, NEG_BIG)
        m_neg[...] = jnp.full_like(m_neg, NEG_BIG)
        l_pos[...] = jnp.zeros_like(l_pos)
        l_neg[...] = jnp.zeros_like(l_neg)

    a = a_ref[...].astype(jnp.float32)      # (TM, D)
    ct = ct_ref[...].astype(jnp.float32)    # (D, TC)
    la = la_ref[...]                        # (TM, 1) int32
    lc = lc_ref[...]                        # (1, TC) int32
    tm, d_dim = a.shape
    tc = ct.shape[1]

    # Row statistics: reused for both the distance expansion and the L2 term.
    sq_a = jnp.sum(a * a, axis=1, keepdims=True)     # (TM, 1)
    sm_a = jnp.sum(a, axis=1, keepdims=True)         # (TM, 1)
    sq_c = jnp.sum(ct * ct, axis=0, keepdims=True)   # (1, TC)
    sm_c = jnp.sum(ct, axis=0, keepdims=True)        # (1, TC)

    # Gram matrix on the MXU: (TM, D) @ (D, TC) -> (TM, TC), f32 accumulate.
    # TODO(synk): optionally cast a/ct to bf16 here (keep f32 accumulate) for
    # ~2x MXU throughput on v6e/v7x once tolerance is re-validated.
    g = jax.lax.dot_general(a, ct, (((1,), (0,)), ((), ())),
                            preferred_element_type=jnp.float32)

    # ||a - c + eps||^2 expanded (matches nn.PairwiseDistance exactly).
    d2 = (sq_a + sq_c - 2.0 * g
          + 2.0 * EPS * (sm_a - sm_c)
          + float(d_dim) * EPS * EPS)
    d = jnp.sqrt(jnp.maximum(d2, 0.0))               # (TM, TC)

    # 'lifted' mining as label masks; -1 labels mark padded rows/columns.
    row_g = i * tm + jax.lax.broadcasted_iota(jnp.int32, (tm, tc), 0)
    col_g = j * tc + jax.lax.broadcasted_iota(jnp.int32, (tm, tc), 1)
    valid = (la >= 0) & (lc >= 0)                    # (TM, TC)
    same = la == lc                                  # (TM, TC)
    pos_mask = valid & same & (row_g != col_g)       # same label, not self
    neg_mask = valid & jnp.logical_not(same)         # different label

    s_pos = jnp.where(pos_mask, d, NEG_BIG)
    s_neg = jnp.where(neg_mask, MARGIN - d, NEG_BIG)

    def online_lse(m_ref, l_ref, s):
        m_new = jnp.maximum(m_ref[...], jnp.max(s, axis=1, keepdims=True))
        l_ref[...] = (l_ref[...] * jnp.exp(m_ref[...] - m_new)
                      + jnp.sum(jnp.exp(s - m_new), axis=1, keepdims=True))
        m_ref[...] = m_new

    online_lse(m_pos, l_pos, s_pos)
    online_lse(m_neg, l_neg, s_neg)

    @pl.when(j == pl.num_programs(1) - 1)
    def _finalize():
        pos_lse = m_pos[...] + jnp.log(l_pos[...])
        neg_lse = m_neg[...] + jnp.log(l_neg[...])
        per_anchor = jnp.maximum(pos_lse + neg_lse, 0.0)
        # 'lifted' mining uses every batch row (in order) as an anchor, so the
        # per-anchor mean of ||x_i|| equals the batch mean -> fold the L2 term
        # here, reusing sq_a from the Gram expansion.
        out_ref[...] = per_anchor + L2_WEIGHT * jnp.sqrt(sq_a)


@functools.partial(jax.jit, static_argnames=("tile_m", "tile_c"))
def lifted_criterion(batch, labels, tile_m=None, tile_c=None):
    """loss = mean_i relu(lse_p d(i,p) + lse_n (margin - d(i,n)))
              + l2_weight * mean_i ||batch_i||_2,  with 'lifted' mining."""
    B, D = batch.shape
    if tile_m is None:
        tile_m = min(128, _round_up(B, 8))
    if tile_c is None:
        tile_c = min(256, _round_up(B, 128))
    bm = _round_up(B, tile_m)
    bc = _round_up(B, tile_c)

    labels = labels.astype(jnp.int32)
    anchors_p = jnp.zeros((bm, D), batch.dtype).at[:B].set(batch)
    cands_t = jnp.zeros((D, bc), batch.dtype).at[:, :B].set(batch.T)
    la = jnp.full((bm, 1), -1, jnp.int32).at[:B, 0].set(labels)
    lc = jnp.full((1, bc), -1, jnp.int32).at[0, :B].set(labels)

    grid = (bm // tile_m, bc // tile_c)
    per_anchor = pl.pallas_call(
        _lifted_kernel,
        out_shape=jax.ShapeDtypeStruct((bm, 1), jnp.float32),
        grid_spec=pltpu.PrefetchScalarGridSpec(
            num_scalar_prefetch=0,
            grid=grid,
            in_specs=[
                pl.BlockSpec((tile_m, D), lambda i, j: (i, 0)),   # anchor rows
                pl.BlockSpec((D, tile_c), lambda i, j: (0, j)),   # candidates^T
                pl.BlockSpec((tile_m, 1), lambda i, j: (i, 0)),   # anchor labels
                pl.BlockSpec((1, tile_c), lambda i, j: (0, j)),   # cand labels
            ],
            out_specs=pl.BlockSpec((tile_m, 1), lambda i, j: (i, 0)),
            scratch_shapes=[pltpu.VMEM((tile_m, 1), jnp.float32)] * 4,
        ),
        compiler_params=pltpu.CompilerParams(
            dimension_semantics=("parallel", "arbitrary")),
    )(anchors_p, cands_t, la, lc)

    # Tiny final mean over the valid anchors (kept outside the kernel so the
    # anchor grid axis can stay "parallel" across TensorCores without races).
    return jnp.mean(per_anchor[:B, 0])


# --------------------------------------------------------------------------
# Reference (mirrors the PyTorch forward via explicit gathers) for validation.
# --------------------------------------------------------------------------
def lifted_sampling(labels):
    """Deterministic 'lifted' sampler: every sample is an anchor; positives are
    all same-label samples (excluding itself); negatives are all other-label
    samples. Equal class sizes keep the index arrays rectangular/static."""
    labels = np.asarray(labels)
    B = labels.shape[0]
    anchors = np.arange(B, dtype=np.int32)
    positives = np.asarray(
        [[j for j in range(B) if labels[j] == labels[i] and j != i] for i in range(B)],
        dtype=np.int32)
    negatives = np.asarray(
        [[j for j in range(B) if labels[j] != labels[i]] for i in range(B)],
        dtype=np.int32)
    return anchors, positives, negatives


def reference_loss(batch, labels):
    a_idx, p_idx, n_idx = lifted_sampling(labels)
    a, pos, neg = batch[a_idx], batch[p_idx], batch[n_idx]
    dp = jnp.sqrt(jnp.sum((a[:, None, :] - pos + EPS) ** 2, axis=-1))
    dn = jnp.sqrt(jnp.sum((a[:, None, :] - neg + EPS) ** 2, axis=-1))
    pos_t = jax.scipy.special.logsumexp(dp, axis=1)
    neg_t = jax.scipy.special.logsumexp(MARGIN - dn, axis=1)
    per = jnp.maximum(pos_t + neg_t, 0.0)
    return jnp.mean(per) + L2_WEIGHT * jnp.mean(jnp.linalg.norm(batch, axis=1))


if __name__ == "__main__":
    # The Gram-matrix distances run through the MXU; its f32 matmul may use
    # bf16 passes depending on the backend's default precision, so compare a
    # little looser than a pure-VPU f32 path would need.
    RTOL = ATOL = 5e-3

    key = jax.random.PRNGKey(0)
    k1, k2 = jax.random.split(key)

    # Small case (single grid step after padding candidates to one 128 tile).
    B, D = 8, 32
    labels = jnp.array([0, 0, 0, 0, 1, 1, 1, 1], dtype=jnp.int32)  # 2 classes x 4
    batch = jax.random.normal(k1, (B, D), dtype=jnp.float32)
    loss = jax.block_until_ready(lifted_criterion(batch, labels))
    ref = reference_loss(batch, labels)
    assert np.allclose(np.asarray(loss), np.asarray(ref), rtol=RTOL, atol=ATOL), (loss, ref)

    # Larger case exercising the tiled grid + online logsumexp across candidate
    # tiles (grid = (20, 2) with these tile sizes).
    B2, D2 = 160, 32
    labels2 = jnp.repeat(jnp.arange(2, dtype=jnp.int32), B2 // 2)   # 2 classes x 80
    batch2 = jax.random.normal(k2, (B2, D2), dtype=jnp.float32)
    loss2 = jax.block_until_ready(
        lifted_criterion(batch2, labels2, tile_m=8, tile_c=128))
    ref2 = reference_loss(batch2, labels2)
    assert np.allclose(np.asarray(loss2), np.asarray(ref2), rtol=RTOL, atol=ATOL), (loss2, ref2)

    print("KERNEL_OK")
</pallas_src>

<mosaic_0001>
module attributes {stable_mosaic.version = 11 : i64} {
  func.func @_lifted_kernel(%arg0: i32, %arg1: i32, %arg2: memref<8x32xf32, #tpu.memory_space<vmem>>, %arg3: memref<32x128xf32, #tpu.memory_space<vmem>>, %arg4: memref<8x1xi32, #tpu.memory_space<vmem>>, %arg5: memref<1x128xi32, #tpu.memory_space<vmem>>, %arg6: memref<8x1xf32, #tpu.memory_space<vmem>>, %arg7: memref<8x1xf32, #tpu.memory_space<vmem>>, %arg8: memref<8x1xf32, #tpu.memory_space<vmem>>, %arg9: memref<8x1xf32, #tpu.memory_space<vmem>>, %arg10: memref<8x1xf32, #tpu.memory_space<vmem>>) attributes {dimension_semantics = [#tpu.dimension_semantics<parallel>, #tpu.dimension_semantics<arbitrary>], iteration_bounds = array<i64: 1, 1>, scalar_prefetch = 0 : i64, scratch_operands = 4 : i64, tpu.core_type = #tpu.core_type<tc>, window_params = [{transform_indices = @transform_0, window_bounds = array<i64: 8, 32>}, {transform_indices = @transform_1, window_bounds = array<i64: 32, 128>}, {transform_indices = @transform_2, window_bounds = array<i64: 8, 1>}, {transform_indices = @transform_3, window_bounds = array<i64: 1, 128>}, {transform_indices = @transform_4, window_bounds = array<i64: 8, 1>}]} {
    %c0_i32 = arith.constant 0 : i32
    %0 = arith.cmpi eq, %arg1, %c0_i32 : i32
    %1 = arith.extui %0 : i1 to i32
    %c0_i32_0 = arith.constant 0 : i32
    %2 = arith.cmpi ne, %1, %c0_i32_0 : i32
    scf.if %2 {
      %cst_48 = arith.constant -1.000000e+30 : f32
      %101 = vector.broadcast %cst_48 : f32 to vector<8x1xf32>
      %c0_49 = arith.constant 0 : index
      %c0_50 = arith.constant 0 : index
      %102 = vector.load %arg7[%c0_49, %c0_50] : memref<8x1xf32, #tpu.memory_space<vmem>>, vector<8x1xf32>
      tpu.vector_store %arg7[%c0_49, %c0_50], %101 {strides = array<i32>} : memref<8x1xf32, #tpu.memory_space<vmem>>, vector<8x1xf32>,
      %cst_51 = arith.constant -1.000000e+30 : f32
      %103 = vector.broadcast %cst_51 : f32 to vector<8x1xf32>
      %c0_52 = arith.constant 0 : index
      %c0_53 = arith.constant 0 : index
      %104 = vector.load %arg9[%c0_52, %c0_53] : memref<8x1xf32, #tpu.memory_space<vmem>>, vector<8x1xf32>
      tpu.vector_store %arg9[%c0_52, %c0_53], %103 {strides = array<i32>} : memref<8x1xf32, #tpu.memory_space<vmem>>, vector<8x1xf32>,
      %cst_54 = arith.constant 0.000000e+00 : f32
      %105 = vector.broadcast %cst_54 : f32 to vector<8x1xf32>
      %c0_55 = arith.constant 0 : index
      %c0_56 = arith.constant 0 : index
      %106 = vector.load %arg8[%c0_55, %c0_56] : memref<8x1xf32, #tpu.memory_space<vmem>>, vector<8x1xf32>
      tpu.vector_store %arg8[%c0_55, %c0_56], %105 {strides = array<i32>} : memref<8x1xf32, #tpu.memory_space<vmem>>, vector<8x1xf32>,
      %cst_57 = arith.constant 0.000000e+00 : f32
      %107 = vector.broadcast %cst_57 : f32 to vector<8x1xf32>
      %c0_58 = arith.constant 0 : index
      %c0_59 = arith.constant 0 : index
      %108 = vector.load %arg10[%c0_58, %c0_59] : memref<8x1xf32, #tpu.memory_space<vmem>>, vector<8x1xf32>
      tpu.vector_store %arg10[%c0_58, %c0_59], %107 {strides = array<i32>} : memref<8x1xf32, #tpu.memory_space<vmem>>, vector<8x1xf32>,
    } else {
    }
    %c0 = arith.constant 0 : index
    %c0_1 = arith.constant 0 : index
    %3 = vector.load %arg2[%c0, %c0_1] : memref<8x32xf32, #tpu.memory_space<vmem>>, vector<8x32xf32>
    %c0_2 = arith.constant 0 : index
    %c0_3 = arith.constant 0 : index
    %4 = vector.load %arg3[%c0_2, %c0_3] : memref<32x128xf32, #tpu.memory_space<vmem>>, vector<32x128xf32>
    %c0_4 = arith.constant 0 : index
    %c0_5 = arith.constant 0 : index
    %5 = vector.load %arg4[%c0_4, %c0_5] : memref<8x1xi32, #tpu.memory_space<vmem>>, vector<8x1xi32>
    %c0_6 = arith.constant 0 : index
    %c0_7 = arith.constant 0 : index
    %6 = vector.load %arg5[%c0_6, %c0_7] : memref<1x128xi32, #tpu.memory_space<vmem>>, vector<1x128xi32>
    %7 = arith.mulf %3, %3 : vector<8x32xf32>
    %cst = arith.constant dense<0.000000e+00> : vector<8xf32>
    %8 = vector.multi_reduction <add>, %7, %cst [1] : vector<8x32xf32> to vector<8xf32>
    %9 = vector.shape_cast %8 : vector<8xf32> to vector<8x1xf32>
    %cst_8 = arith.constant dense<0.000000e+00> : vector<8xf32>
    %10 = vector.multi_reduction <add>, %3, %cst_8 [1] : vector<8x32xf32> to vector<8xf32>
    %11 = vector.shape_cast %10 : vector<8xf32> to vector<8x1xf32>
    %12 = arith.mulf %4, %4 : vector<32x128xf32>
    %cst_9 = arith.constant dense<0.000000e+00> : vector<128xf32>
    %13 = vector.multi_reduction <add>, %12, %cst_9 [0] : vector<32x128xf32> to vector<128xf32>
    %14 = vector.shape_cast %13 : vector<128xf32> to vector<1x128xf32>
    %cst_10 = arith.constant dense<0.000000e+00> : vector<128xf32>
    %15 = vector.multi_reduction <add>, %4, %cst_10 [0] : vector<32x128xf32> to vector<128xf32>
    %16 = vector.shape_cast %15 : vector<128xf32> to vector<1x128xf32>
    %cst_11 = arith.constant dense<0.000000e+00> : vector<8x128xf32>
    %17 = tpu.matmul %3, %4, %cst_11 {dimension_numbers = #tpu.dot_dimension_numbers<[1], [0], [0], [1], [0, 0, 1, 1], [], []>} : vector<8x32xf32>, vector<32x128xf32>, vector<8x128xf32> -> vector<8x128xf32>
    %18 = vector.broadcast %9 : vector<8x1xf32> to vector<8x128xf32>
    %19 = vector.broadcast %14 : vector<1x128xf32> to vector<8x128xf32>
    %20 = arith.addf %18, %19 : vector<8x128xf32>
    %cst_12 = arith.constant 2.000000e+00 : f32
    %21 = vector.broadcast %cst_12 : f32 to vector<8x128xf32>
    %22 = arith.mulf %21, %17 : vector<8x128xf32>
    %23 = arith.subf %20, %22 : vector<8x128xf32>
    %24 = vector.broadcast %11 : vector<8x1xf32> to vector<8x128xf32>
    %25 = vector.broadcast %16 : vector<1x128xf32> to vector<8x128xf32>
    %26 = arith.subf %24, %25 : vector<8x128xf32>
    %cst_13 = arith.constant 2.000000e-06 : f32
    %27 = vector.broadcast %cst_13 : f32 to vector<8x128xf32>
    %28 = arith.mulf %27, %26 : vector<8x128xf32>
    %29 = arith.addf %23, %28 : vector<8x128xf32>
    %cst_14 = arith.constant 3.200000e-11 : f32
    %30 = vector.broadcast %cst_14 : f32 to vector<8x128xf32>
    %31 = arith.addf %29, %30 : vector<8x128xf32>
    %cst_15 = arith.constant 0.000000e+00 : f32
    %32 = vector.broadcast %cst_15 : f32 to vector<8x128xf32>
    %33 = arith.maximumf %31, %32 : vector<8x128xf32>
    %34 = math.sqrt %33 : vector<8x128xf32>
    %c8_i32 = arith.constant 8 : i32
    %35 = arith.muli %arg0, %c8_i32 : i32
    %36 = tpu.iota {dimensions = array<i32: 0>} : vector<8x128xi32>
    %37 = vector.broadcast %35 : i32 to vector<8x128xi32>
    %38 = arith.addi %37, %36 : vector<8x128xi32>
    %c128_i32 = arith.constant 128 : i32
    %39 = arith.muli %arg1, %c128_i32 : i32
    %40 = tpu.iota {dimensions = array<i32: 1>} : vector<8x128xi32>
    %41 = vector.broadcast %39 : i32 to vector<8x128xi32>
    %42 = arith.addi %41, %40 : vector<8x128xi32>
    %c0_i32_16 = arith.constant 0 : i32
    %43 = vector.broadcast %c0_i32_16 : i32 to vector<8x1xi32>
    %44 = arith.cmpi sge, %5, %43 : vector<8x1xi32>
    %c0_i32_17 = arith.constant 0 : i32
    %45 = vector.broadcast %c0_i32_17 : i32 to vector<1x128xi32>
    %46 = arith.cmpi sge, %6, %45 : vector<1x128xi32>
    %47 = vector.broadcast %44 : vector<8x1xi1> to vector<8x128xi1>
    %48 = vector.broadcast %46 : vector<1x128xi1> to vector<8x128xi1>
    %49 = arith.andi %47, %48 : vector<8x128xi1>
    %50 = vector.broadcast %5 : vector<8x1xi32> to vector<8x128xi32>
    %51 = vector.broadcast %6 : vector<1x128xi32> to vector<8x128xi32>
    %52 = arith.cmpi eq, %50, %51 : vector<8x128xi32>
    %53 = arith.andi %49, %52 : vector<8x128xi1>
    %54 = arith.cmpi ne, %38, %42 : vector<8x128xi32>
    %55 = arith.andi %53, %54 : vector<8x128xi1>
    %cst_18 = arith.constant dense<true> : vector<8x128xi1>
    %56 = arith.xori %52, %cst_18 : vector<8x128xi1>
    %57 = arith.andi %49, %56 : vector<8x128xi1>
    %cst_19 = arith.constant -1.000000e+30 : f32
    %58 = vector.broadcast %cst_19 : f32 to vector<8x128xf32>
    %59 = arith.select %55, %34, %58 : vector<8x128xi1>, vector<8x128xf32>
    %cst_20 = arith.constant 1.000000e+00 : f32
    %60 = vector.broadcast %cst_20 : f32 to vector<8x128xf32>
    %61 = arith.subf %60, %34 : vector<8x128xf32>
    %cst_21 = arith.constant -1.000000e+30 : f32
    %62 = vector.broadcast %cst_21 : f32 to vector<8x128xf32>
    %63 = arith.select %57, %61, %62 : vector<8x128xi1>, vector<8x128xf32>
    %c0_22 = arith.constant 0 : index
    %c0_23 = arith.constant 0 : index
    %64 = vector.load %arg7[%c0_22, %c0_23] : memref<8x1xf32, #tpu.memory_space<vmem>>, vector<8x1xf32>
    %cst_24 = arith.constant dense<0xFF800000> : vector<8xf32>
    %65 = vector.multi_reduction <maximumf>, %59, %cst_24 [1] : vector<8x128xf32> to vector<8xf32>
    %66 = vector.shape_cast %65 : vector<8xf32> to vector<8x1xf32>
    %67 = arith.maximumf %64, %66 : vector<8x1xf32>
    %c0_25 = arith.constant 0 : index
    %c0_26 = arith.constant 0 : index
    %68 = vector.load %arg8[%c0_25, %c0_26] : memref<8x1xf32, #tpu.memory_space<vmem>>, vector<8x1xf32>
    %c0_27 = arith.constant 0 : index
    %c0_28 = arith.constant 0 : index
    %69 = vector.load %arg7[%c0_27, %c0_28] : memref<8x1xf32, #tpu.memory_space<vmem>>, vector<8x1xf32>
    %70 = arith.subf %69, %67 : vector<8x1xf32>
    %71 = math.exp %70 : vector<8x1xf32>
    %72 = arith.mulf %68, %71 : vector<8x1xf32>
    %73 = vector.broadcast %67 : vector<8x1xf32> to vector<8x128xf32>
    %74 = arith.subf %59, %73 : vector<8x128xf32>
    %75 = math.exp %74 : vector<8x128xf32>
    %cst_29 = arith.constant dense<0.000000e+00> : vector<8xf32>
    %76 = vector.multi_reduction <add>, %75, %cst_29 [1] : vector<8x128xf32> to vector<8xf32>
    %77 = vector.shape_cast %76 : vector<8xf32> to vector<8x1xf32>
    %78 = arith.addf %72, %77 : vector<8x1xf32>
    %c0_30 = arith.constant 0 : index
    %c0_31 = arith.constant 0 : index
    %79 = vector.load %arg8[%c0_30, %c0_31] : memref<8x1xf32, #tpu.memory_space<vmem>>, vector<8x1xf32>
    tpu.vector_store %arg8[%c0_30, %c0_31], %78 {strides = array<i32>} : memref<8x1xf32, #tpu.memory_space<vmem>>, vector<8x1xf32>,
    %c0_32 = arith.constant 0 : index
    %c0_33 = arith.constant 0 : index
    %80 = vector.load %arg7[%c0_32, %c0_33] : memref<8x1xf32, #tpu.memory_space<vmem>>, vector<8x1xf32>
    tpu.vector_store %arg7[%c0_32, %c0_33], %67 {strides = array<i32>} : memref<8x1xf32, #tpu.memory_space<vmem>>, vector<8x1xf32>,
    %c0_34 = arith.constant 0 : index
    %c0_35 = arith.constant 0 : index
    %81 = vector.load %arg9[%c0_34, %c0_35] : memref<8x1xf32, #tpu.memory_space<vmem>>, vector<8x1xf32>
    %cst_36 = arith.constant dense<0xFF800000> : vector<8xf32>
    %82 = vector.multi_reduction <maximumf>, %63, %cst_36 [1] : vector<8x128xf32> to vector<8xf32>
    %83 = vector.shape_cast %82 : vector<8xf32> to vector<8x1xf32>
    %84 = arith.maximumf %81, %83 : vector<8x1xf32>
    %c0_37 = arith.constant 0 : index
    %c0_38 = arith.constant 0 : index
    %85 = vector.load %arg10[%c0_37, %c0_38] : memref<8x1xf32, #tpu.memory_space<vmem>>, vector<8x1xf32>
    %c0_39 = arith.constant 0 : index
    %c0_40 = arith.constant 0 : index
    %86 = vector.load %arg9[%c0_39, %c0_40] : memref<8x1xf32, #tpu.memory_space<vmem>>, vector<8x1xf32>
    %87 = arith.subf %86, %84 : vector<8x1xf32>
    %88 = math.exp %87 : vector<8x1xf32>
    %89 = arith.mulf %85, %88 : vector<8x1xf32>
    %90 = vector.broadcast %84 : vector<8x1xf32> to vector<8x128xf32>
    %91 = arith.subf %63, %90 : vector<8x128xf32>
    %92 = math.exp %91 : vector<8x128xf32>
    %cst_41 = arith.constant dense<0.000000e+00> : vector<8xf32>
    %93 = vector.multi_reduction <add>, %92, %cst_41 [1] : vector<8x128xf32> to vector<8xf32>
    %94 = vector.shape_cast %93 : vector<8xf32> to vector<8x1xf32>
    %95 = arith.addf %89, %94 : vector<8x1xf32>
    %c0_42 = arith.constant 0 : index
    %c0_43 = arith.constant 0 : index
    %96 = vector.load %arg10[%c0_42, %c0_43] : memref<8x1xf32, #tpu.memory_space<vmem>>, vector<8x1xf32>
    tpu.vector_store %arg10[%c0_42, %c0_43], %95 {strides = array<i32>} : memref<8x1xf32, #tpu.memory_space<vmem>>, vector<8x1xf32>,
    %c0_44 = arith.constant 0 : index
    %c0_45 = arith.constant 0 : index
    %97 = vector.load %arg9[%c0_44, %c0_45] : memref<8x1xf32, #tpu.memory_space<vmem>>, vector<8x1xf32>
    tpu.vector_store %arg9[%c0_44, %c0_45], %84 {strides = array<i32>} : memref<8x1xf32, #tpu.memory_space<vmem>>, vector<8x1xf32>,
    %c0_i32_46 = arith.constant 0 : i32
    %98 = arith.cmpi eq, %arg1, %c0_i32_46 : i32
    %99 = arith.extui %98 : i1 to i32
    %c0_i32_47 = arith.constant 0 : i32
    %100 = arith.cmpi ne, %99, %c0_i32_47 : i32
    scf.if %100 {
      %c0_48 = arith.constant 0 : index
      %c0_49 = arith.constant 0 : index
      %101 = vector.load %arg7[%c0_48, %c0_49] : memref<8x1xf32, #tpu.memory_space<vmem>>, vector<8x1xf32>
      %c0_50 = arith.constant 0 : index
      %c0_51 = arith.constant 0 : index
      %102 = vector.load %arg8[%c0_50, %c0_51] : memref<8x1xf32, #tpu.memory_space<vmem>>, vector<8x1xf32>
      %103 = math.log %102 : vector<8x1xf32>
      %104 = arith.addf %101, %103 : vector<8x1xf32>
      %c0_52 = arith.constant 0 : index
      %c0_53 = arith.constant 0 : index
      %105 = vector.load %arg9[%c0_52, %c0_53] : memref<8x1xf32, #tpu.memory_space<vmem>>, vector<8x1xf32>
      %c0_54 = arith.constant 0 : index
      %c0_55 = arith.constant 0 : index
      %106 = vector.load %arg10[%c0_54, %c0_55] : memref<8x1xf32, #tpu.memory_space<vmem>>, vector<8x1xf32>
      %107 = math.log %106 : vector<8x1xf32>
      %108 = arith.addf %105, %107 : vector<8x1xf32>
      %109 = arith.addf %104, %108 : vector<8x1xf32>
      %cst_56 = arith.constant 0.000000e+00 : f32
      %110 = vector.broadcast %cst_56 : f32 to vector<8x1xf32>
      %111 = arith.maximumf %109, %110 : vector<8x1xf32>
      %112 = math.sqrt %9 : vector<8x1xf32>
      %cst_57 = arith.constant 5.000000e-03 : f32
      %113 = vector.broadcast %cst_57 : f32 to vector<8x1xf32>
      %114 = arith.mulf %113, %112 : vector<8x1xf32>
      %115 = arith.addf %111, %114 : vector<8x1xf32>
      %c0_58 = arith.constant 0 : index
      %c0_59 = arith.constant 0 : index
      %116 = vector.load %arg6[%c0_58, %c0_59] : memref<8x1xf32, #tpu.memory_space<vmem>>, vector<8x1xf32>
      tpu.vector_store %arg6[%c0_58, %c0_59], %115 {strides = array<i32>} : memref<8x1xf32, #tpu.memory_space<vmem>>, vector<8x1xf32>,
    } else {
    }
    return
  }
  func.func @transform_0(%arg0: i32, %arg1: i32) -> (i32, i32) {
    %c0_i32 = arith.constant 0 : i32
    %c0_i32_0 = arith.constant 0 : i32
    return %arg0, %c0_i32 : i32, i32
  }
  func.func @transform_1(%arg0: i32, %arg1: i32) -> (i32, i32) {
    %c0_i32 = arith.constant 0 : i32
    %c0_i32_0 = arith.constant 0 : i32
    return %c0_i32, %arg1 : i32, i32
  }
  func.func @transform_2(%arg0: i32, %arg1: i32) -> (i32, i32) {
    %c0_i32 = arith.constant 0 : i32
    %c0_i32_0 = arith.constant 0 : i32
    return %arg0, %c0_i32 : i32, i32
  }
  func.func @transform_3(%arg0: i32, %arg1: i32) -> (i32, i32) {
    %c0_i32 = arith.constant 0 : i32
    %c0_i32_0 = arith.constant 0 : i32
    return %c0_i32, %arg1 : i32, i32
  }
  func.func @transform_4(%arg0: i32, %arg1: i32) -> (i32, i32) {
    %c0_i32 = arith.constant 0 : i32
    %c0_i32_0 = arith.constant 0 : i32
    return %arg0, %c0_i32 : i32, i32
  }
}

</mosaic_0001>

<llo_original>
// kernel: lifted_criterion.1
$region0: #{lifted_criterion.1}
  #allocation0 [shape = 'u32[]', space=smem, size = 0x4, offset = 0x4, fixed_abs, tag = 'smem constant byte address 0x4 - core index']
  #allocation1 [shape = 'u32[144,128]{1,0:T(1,128)}', space=vmem, size = 0x12000, scoped, tag = 'internal scratch']
  #allocation2 [shape = 'f32[8,1]{1,0:T(8,128)}', space=vmem, size = 0x1000, scoped, tag = 'scratch operand']
  #allocation3 [shape = 'f32[8,1]{1,0:T(8,128)}', space=vmem, size = 0x1000, scoped, tag = 'scratch operand']
  #allocation4 [shape = 'f32[8,1]{1,0:T(8,128)}', space=vmem, size = 0x1000, scoped, tag = 'scratch operand']
  #allocation5 [shape = 'f32[8,1]{1,0:T(8,128)}', space=vmem, size = 0x1000, scoped, tag = 'scratch operand']
  %s0 = inlined_call_operand.vmem [shape: f32[8,32], index: 0, kind: input, shape index: {}]
  %s1 = inlined_call_operand.vmem [shape: f32[32,128], index: 1, kind: input, shape index: {}]
  %s2 = inlined_call_operand.vmem [shape: s32[8,1], index: 2, kind: input, shape index: {}]
  %s3 = inlined_call_operand.vmem [shape: s32[1,128], index: 3, kind: input, shape index: {}]
  %s4 = inlined_call_operand.vmem [shape: f32[8,1], index: 4, kind: output, shape index: {}]
  %s5 = sld [smem:[#allocation0]]
  $region34: #{lifted_criterion.1} parent=0
    _
  %s7 = ssub.s32 1, %s5
  %s8 = scalar_select 0, %s7, %s5
  // Predicated region
  $region2: #{lifted_criterion.1} parent=0 // pred_check
    _
  $region3: #{lifted_criterion.1} parent=0 // pred_check_branch
    %10 = sbr.rel (0) target = $region5
  $region4: #{lifted_criterion.1} parent=0 // pred_region
    _
  $region5: #{lifted_criterion.1} parent=0 // pred_fallthru
    _
  // Predicated region
  $region6: #{lifted_criterion.1} parent=0 // pred_check
    _
  $region7: #{lifted_criterion.1} parent=0 // pred_check_branch
    %12 = sbr.rel (0) target = $region9
  $region8: #{lifted_criterion.1} parent=0 // pred_region
    _
  $region9: #{lifted_criterion.1} parent=0 // pred_fallthru
    _
  // Predicated region
  $region10: #{lifted_criterion.1} parent=0 // pred_check
    _
  $region11: #{lifted_criterion.1} parent=0 // pred_check_branch
    %14 = sbr.rel (0) target = $region13
  $region12: #{lifted_criterion.1} parent=0 // pred_region
    _
  $region13: #{lifted_criterion.1} parent=0 // pred_fallthru
    _
  // Predicated region
  $region14: #{lifted_criterion.1} parent=0 // pred_check
    _
  $region15: #{lifted_criterion.1} parent=0 // pred_check_branch
    %16 = sbr.rel (0) target = $region17
  $region16: #{lifted_criterion.1} parent=0 // pred_region
    _
  $region17: #{lifted_criterion.1} parent=0 // pred_fallthru
    _
  %p17 = scmp.eq.s32.totalorder 0, 0
  // Predicated region
  $region18: #{lifted_criterion.1} parent=0 // pred_check
    %p18 = pneg %p17
  $region19: #{lifted_criterion.1} parent=0 // pred_check_branch
    %20 = sbr.rel (%p18) target = $region21
  $region20: #{lifted_criterion.1} parent=0 // pred_region
    %vm21 = vcmask 7168
    %22 = vst.msk [vmem:[#allocation2] sm:$0xff] %vm21, -1e+30
    %23 = vst.msk [vmem:[#allocation4] sm:$0xff] %vm21, -1e+30
    %24 = vst.msk [vmem:[#allocation3] sm:$0xff] %vm21, 0.0
    %25 = vst.msk [vmem:[#allocation5] sm:$0xff] %vm21, 0.0
  $region21: #{lifted_criterion.1} parent=0 // pred_fallthru
    _
  %v26 = vld [vmem:[%s0] sm:$0xff]
  %v27 = vld [vmem:[%s1] sm:$0xff]
  %v28 = vld [vmem:[%s1 + $0x8] sm:$0xff]
  %v29 = vld [vmem:[%s1 + $0x10] sm:$0xff]
  %v30 = vld [vmem:[%s1 + $0x18] sm:$0xff]
  %v31 = vld [vmem:[%s2] sm:$0xff]
  %v32 = vld [vmem:[%s3] sm:$0x1]
  %v33 = vmul.f32 %v26, %v26
  %vm34 = vcmask 261120
  %v35 = vsel %vm34, %v33, 0.0
  %36 = vadd.xlane.f32.xlu0 %v35
  %v37 = vpop.xlane.xlu0 %36
  %v38 = vsel %vm34, %v26, 0.0
  %39 = vadd.xlane.f32.xlu0 %v38
  %v40 = vpop.xlane.xlu0 %39
  %v41 = vmul.f32 %v27, %v27
  %v42 = vmul.f32 %v28, %v28
  %v43 = vmul.f32 %v29, %v29
  %v44 = vmul.f32 %v30, %v30
  %v45 = vadd.f32 %v41, %v42
  %v46 = vadd.f32 %v45, %v43
  %v47 = vadd.f32 %v46, %v44
  %v48 = vrot.slane %v47, 4
  %v49 = vadd.f32 %v47, %v48
  %v50 = vrot.slane %v49, 2
  %v51 = vadd.f32 %v49, %v50
  %v52 = vrot.slane %v51, 1
  %v53 = vadd.f32 %v51, %v52
  %v54 = vadd.f32 %v27, %v28
  %v55 = vadd.f32 %v54, %v29
  %v56 = vadd.f32 %v55, %v30
  %v57 = vrot.slane %v56, 4
  %v58 = vadd.f32 %v56, %v57
  %v59 = vrot.slane %v58, 2
  %v60 = vadd.f32 %v58, %v59
  %v61 = vrot.slane %v60, 1
  %v62 = vadd.f32 %v60, %v61
  %v64 = vsel %vm34, %v26, 0
  %66 = vmatprep.subr.mxu0 0.0
  %67 = vmatpush1.msra.mxu0 %v27
  %68 = vmatprep.subr.mxu0 0.0
  %69 = vmatpush1.msra.mxu0 %v28
  %70 = vmatprep.subr.mxu0 0.0
  %71 = vmatpush1.msra.mxu0 %v29
  %72 = vmatprep.subr.mxu0 0.0
  %73 = vmatpush1.msra.mxu0 %v30
  %74 = vmatprep.subr.mxu0 0.0
  %75 = vmatpush1.msra.mxu0 0.0
  %76 = vmatprep.subr.mxu0 0.0
  %77 = vmatpush1.msra.mxu0 0.0
  %78 = vmatprep.subr.mxu0 0.0
  %79 = vmatpush1.msra.mxu0 0.0
  %80 = vmatprep.subr.mxu0 0.0
  %81 = vmatpush1.msra.mxu0 0.0
  %82 = vmatprep.subr.mxu0 0.0
  %83 = vmatpush1.msra.mxu0 0.0
  %84 = vmatprep.subr.mxu0 0.0
  %85 = vmatpush1.msra.mxu0 0.0
  %86 = vmatprep.subr.mxu0 0.0
  %87 = vmatpush1.msra.mxu0 0.0
  %88 = vmatprep.subr.mxu0 0.0
  %89 = vmatpush1.msra.mxu0 0.0
  %90 = vmatprep.subr.mxu0 0.0
  %91 = vmatpush1.msra.mxu0 0.0
  %92 = vmatprep.subr.mxu0 0.0
  %93 = vmatpush1.msra.mxu0 0.0
  %94 = vmatprep.subr.mxu0 0.0
  %95 = vmatpush1.msra.mxu0 0.0
  %96 = vmatprep.subr.mxu0 0.0
  %97 = vmatpush1.msra.mxu0 0.0
  %98 = vmatprep.subr.mxu0 0.0
  %99 = vmatpush1.msra.mxu0 0.0
  %100 = vmatprep.subr.mxu0 0.0
  %101 = vmatpush1.msra.mxu0 0.0
  %102 = vmatprep.subr.mxu0 0.0
  %103 = vmatpush1.msra.mxu0 0.0
  %104 = vmatprep.subr.mxu0 0.0
  %105 = vmatpush1.msra.mxu0 0.0
  %106 = vmatprep.subr.mxu0 0.0
  %107 = vmatpush1.msra.mxu0 0.0
  %108 = vmatprep.subr.mxu0 0.0
  %109 = vmatpush1.msra.mxu0 0.0
  %110 = vmatprep.subr.mxu0 0.0
  %111 = vmatpush1.msra.mxu0 0.0
  %112 = vmatprep.subr.mxu0 0.0
  %113 = vmatpush1.msra.mxu0 0.0
  %114 = vmatprep.subr.mxu0 0.0
  %115 = vmatpush1.msra.mxu0 0.0
  %116 = vmatprep.subr.mxu0 0.0
  %117 = vmatpush1.msra.mxu0 0.0
  %118 = vmatprep.subr.mxu0 0.0
  %119 = vmatpush1.msra.mxu0 0.0
  %120 = vmatprep.subr.mxu0 0.0
  %121 = vmatpush1.msra.mxu0 0.0
  %122 = vmatprep.subr.mxu0 0.0
  %123 = vmatpush1.msra.mxu0 0.0
  %124 = vmatprep.subr.mxu0 0.0
  %125 = vmatpush1.msra.mxu0 0.0
  %126 = vmatprep.subr.mxu0 0.0
  %127 = vmatpush1.msra.mxu0 0.0
  %128 = vmatprep.subr.mxu0 0.0
  %129 = vmatpush1.msra.mxu0 0.0
  %130 = vmatprep.mubr.f32.mxu0 0.0
  %131 = vmatmul.mubr.f32.gmra.mrb[0].mxu0 %v64
  %v132 = vpop.f32.mrb[0].mxu0
  %v133 = vadd.f32 0.0, %v132
  %v134 = vpop.f32.mrb[0].mxu0
  %135 = vdwg.mxu0
  %v136 = vadd.f32 %v37, %v53
  %v137 = vmul.f32 %v133, 2.0
  %v138 = vsub.f32 %v136, %v137
  %v139 = vsub.f32 %v40, %v62
  %v140 = vmul.f32 %v139, 2e-06
  %v141 = vadd.f32 %v138, %v140
  %v142 = vadd.f32 %v141, 3.2e-11
  %v143 = vmax.f32 %v142, 0.0
  %v144 = vrsqrt.pop %v143
  %v145 = vmul.f32 %v143, %v144
  %vm146 = vcmp.eq.f32.partialorder %v143, inf
  %v147 = vsel %vm146, %v143, %v145
  %vm148 = vcmp.eq.f32.partialorder %v143, 0.0
  %v149 = vand.u32 %v143, 2147483648
  %v150 = vsel %vm148, %v149, %v147
  %s151 = smul.u32 0, 8
  %v152 = vlaneseq
  %v153 = vshrl.u32 %v152, 7
  %v154 = vstv %s151
  %v155 = vadd.s32 %v154, %v153
  %s156 = smul.u32 0, 128
  %v157 = vlaneseq
  %v158 = vand.u32 %v157, 127
  %v159 = vstv %s156
  %v160 = vadd.s32 %v159, %v158
  %vm161 = vcmp.ge.s32.totalorder %v31, 0
  %vm162 = vcmp.ge.s32.totalorder %v32, 0
  %v163 = vsel %vm161, 1, 0
  %164 = vset.pattern.permute.xlu0 0
  %165 = vperm.xlu0 %164, %v163
  %v166 = vpop.permute.xlu0 %165
  %vm167 = vcmp.eq.s32.totalorder %v166, 1
  %v168 = vsel %vm162, 1, 0
  %v169 = vlaneseq
  %v170 = vshrl.u32 %v169, 7
  %v171 = vsub.s32 0, %v170
  %v172 = vrot.slane %v168, %v171
  %vm173 = vcmp.eq.s32.totalorder %v172, 1
  %vm174 = vmand %vm167, %vm173
  %175 = vset.pattern.permute.xlu0 0
  %176 = vperm.xlu0 %175, %v31
  %v177 = vpop.permute.xlu0 %176
  %v178 = vlaneseq
  %v179 = vshrl.u32 %v178, 7
  %v180 = vsub.s32 0, %v179
  %v181 = vrot.slane %v32, %v180
  %vm182 = vcmp.eq.s32.totalorder %v177, %v181
  %vm183 = vmand %vm174, %vm182
  %vm184 = vcmp.ne.s32.totalorder %v155, %v160
  %vm185 = vmand %vm183, %vm184
  %vm186 = vmxor %vm182, 1
  %vm187 = vmand %vm174, %vm186
  %v188 = vsel %vm185, %v150, -1e+30
  %v189 = vsub.f32 1.0, %v150
  %v190 = vsel %vm187, %v189, -1e+30
  %v191 = vld [vmem:[#allocation2] sm:$0xff]
  %192 = vmax.xlane.f32.xlu0 %v188
  %v193 = vpop.xlane.xlu0 %192
  %v194 = vmax.f32 %v191, %v193
  %v195 = vld [vmem:[#allocation3] sm:$0xff]
  %v196 = vsub.f32 %v191, %v194
  %v197 = vmul.f32 %v196, 1.442695
  %v198 = vpow.pop %v197
  %v199 = vmul.f32 %v195, %v198
  %201 = vset.pattern.permute.xlu0 0
  %202 = vperm.xlu0 %201, %v194
  %v203 = vpop.permute.xlu0 %202
  %v205 = vsub.f32 %v188, %v203
  %v206 = vmul.f32 %v205, 1.442695
  %v207 = vpow.pop %v206
  %208 = vadd.xlane.f32.xlu0 %v207
  %v209 = vpop.xlane.xlu0 %208
  %v210 = vadd.f32 %v199, %v209
  %vm211 = vcmask 7168
  %212 = vst.msk [vmem:[#allocation3] sm:$0xff] %vm211, %v210
  %213 = vst.msk [vmem:[#allocation2] sm:$0xff] %vm211, %v194
  %v214 = vld [vmem:[#allocation4] sm:$0xff]
  %215 = vmax.xlane.f32.xlu0 %v190
  %v216 = vpop.xlane.xlu0 %215
  %v217 = vmax.f32 %v214, %v216
  %v218 = vld [vmem:[#allocation5] sm:$0xff]
  %v219 = vsub.f32 %v214, %v217
  %v220 = vmul.f32 %v219, 1.442695
  %v221 = vpow.pop %v220
  %v222 = vmul.f32 %v218, %v221
  %224 = vset.pattern.permute.xlu0 0
  %225 = vperm.xlu0 %224, %v217
  %v226 = vpop.permute.xlu0 %225
  %v228 = vsub.f32 %v190, %v226
  %v229 = vmul.f32 %v228, 1.442695
  %v230 = vpow.pop %v229
  %231 = vadd.xlane.f32.xlu0 %v230
  %v232 = vpop.xlane.xlu0 %231
  %v233 = vadd.f32 %v222, %v232
  %234 = vst.msk [vmem:[#allocation5] sm:$0xff] %vm211, %v233
  %235 = vst.msk [vmem:[#allocation4] sm:$0xff] %vm211, %v217
  // Predicated region
  $region22: #{lifted_criterion.1} parent=0 // pred_check
    %p236 = pneg %p17
  $region23: #{lifted_criterion.1} parent=0 // pred_check_branch
    %238 = sbr.rel (%p236) target = $region25
  $region24: #{lifted_criterion.1} parent=0 // pred_region
    %v239 = vld [vmem:[#allocation2] sm:$0xff]
    %v240 = vld [vmem:[#allocation3] sm:$0xff]
    %v241 = vlog2.pop %v240
    %v242 = vmul.f32 %v241, 0.6931472
    %v243 = vadd.f32 %v239, %v242
    %v244 = vld [vmem:[#allocation4] sm:$0xff]
    %v245 = vld [vmem:[#allocation5] sm:$0xff]
    %v246 = vlog2.pop %v245
    %v247 = vmul.f32 %v246, 0.6931472
    %v248 = vadd.f32 %v244, %v247
    %v249 = vadd.f32 %v243, %v248
    %v250 = vmax.f32 %v249, 0.0
    %v251 = vrsqrt.pop %v37
    %v252 = vmul.f32 %v37, %v251
    %vm253 = vcmp.eq.f32.partialorder %v37, inf
    %v254 = vsel %vm253, %v37, %v252
    %vm255 = vcmp.eq.f32.partialorder %v37, 0.0
    %v256 = vand.u32 %v37, 2147483648
    %v257 = vsel %vm255, %v256, %v254
    %v258 = vmul.f32 %v257, 0.005
    %v259 = vadd.f32 %v250, %v258
    %260 = vst.msk [vmem:[%s4] sm:$0xff] %vm211, %v259
  $region25: #{lifted_criterion.1} parent=0 // pred_fallthru
    _
  // Predicated region
  $region26: #{lifted_criterion.1} parent=0 // pred_check
    _
  $region27: #{lifted_criterion.1} parent=0 // pred_check_branch
    %262 = sbr.rel (0) target = $region29
  $region28: #{lifted_criterion.1} parent=0 // pred_region
    _
  $region29: #{lifted_criterion.1} parent=0 // pred_fallthru
    _
  // Predicated region
  $region30: #{lifted_criterion.1} parent=0 // pred_check
    _
  $region31: #{lifted_criterion.1} parent=0 // pred_check_branch
    %264 = sbr.rel (0) target = $region33
  $region32: #{lifted_criterion.1} parent=0 // pred_region
    _
  $region33: #{lifted_criterion.1} parent=0 // pred_fallthru
    _

</llo_original>
